<compile_context>
chip_gen: v5e
topology: v5e:2x2
jax: 0.10.0
libtpu: 0.0.40
codegen_flags: <defaults>
</compile_context>

<pallas_src>
import functools

import jax
import jax.numpy as jnp
from jax.experimental import pallas as pl
from jax.experimental.pallas import tpu as pltpu


def _round_up(x, m):
    return ((x + m - 1) // m) * m


def ncf_kernel(uidx_ref, iidx_ref,                 # scalar prefetch (SMEM, int32)
               emb_user_hbm, emb_item_hbm,         # raw HBM refs (pl.ANY)
               w1u_ref, w1i_ref, b1_ref,           # resident VMEM weights
               w2_ref, b2_ref,
               w3_ref, b3_ref,
               o_ref,                              # (TB, 1) output tile
               ue_buf, ie_buf, sem):               # VMEM scratch + DMA sems
    """One batch tile of the NCF forward: gather + fused MLP head."""
    tile = pl.program_id(0)
    TB = ue_buf.shape[0]
    base = tile * TB

    # ---- gather: DMA the TB user/item embedding rows for this tile ----------
    @pl.loop(0, TB)
    def _issue(r):
        u = uidx_ref[base + r]
        it = iidx_ref[base + r]
        pltpu.make_async_copy(emb_user_hbm.at[u], ue_buf.at[r], sem.at[0]).start()
        pltpu.make_async_copy(emb_item_hbm.at[it], ie_buf.at[r], sem.at[1]).start()

    @pl.loop(0, TB)
    def _drain(r):
        # Per-row waits (same shape as each issued copy); all rows are drained
        # before the compute below touches the buffers.
        pltpu.make_async_copy(emb_user_hbm.at[0], ue_buf.at[r], sem.at[0]).wait()
        pltpu.make_async_copy(emb_item_hbm.at[0], ie_buf.at[r], sem.at[1]).wait()

    ue = ue_buf[...]
    ie = ie_buf[...]

    # ---- fc1 on concat([ue, ie]) == split matmul sum -------------------------
    x = (jnp.dot(ue, w1u_ref[...], preferred_element_type=jnp.float32)
         + jnp.dot(ie, w1i_ref[...], preferred_element_type=jnp.float32)
         + b1_ref[...])
    x = jnp.maximum(x, 0.0)                                    # ReLU

    # ---- fc2 ------------------------------------------------------------------
    x = jnp.dot(x, w2_ref[...], preferred_element_type=jnp.float32) + b2_ref[...]
    x = jnp.maximum(x, 0.0)                                    # ReLU

    # ---- fc3 (H2 -> 1): VPU multiply + lane reduce instead of N=1 MXU matmul --
    logits = jnp.sum(x * w3_ref[...], axis=-1, keepdims=True) + b3_ref[...]
    o_ref[...] = jax.nn.sigmoid(logits)                        # Sigmoid


def ncf_forward(user_indices, item_indices, params, *, tb=256):
    """Full NCF forward in a single fused Pallas kernel (gather + MLP)."""
    emb_user = params["embedding_user"]   # (num_users, E) f32, lives in HBM
    emb_item = params["embedding_item"]   # (num_items, E) f32
    E = emb_user.shape[1]
    H1 = params["w1u"].shape[1]
    H2 = params["w2"].shape[1]

    B = user_indices.shape[0]
    # Batch tile: multiple of 8 sublanes, capped by the (padded) batch.
    TB = min(_round_up(tb, 8), _round_up(B, 8))
    Bp = _round_up(B, TB)
    num_tiles = Bp // TB

    pad = Bp - B
    uidx = jnp.pad(user_indices.astype(jnp.int32), (0, pad))
    iidx = jnp.pad(item_indices.astype(jnp.int32), (0, pad))

    grid_spec = pltpu.PrefetchScalarGridSpec(
        num_scalar_prefetch=2,            # user / item indices -> SMEM
        grid=(num_tiles,),
        in_specs=[
            pl.BlockSpec(memory_space=pl.ANY),                  # embedding_user (HBM)
            pl.BlockSpec(memory_space=pl.ANY),                  # embedding_item (HBM)
            pl.BlockSpec((E, H1), lambda i, u, it: (0, 0)),     # w1u (resident)
            pl.BlockSpec((E, H1), lambda i, u, it: (0, 0)),     # w1i
            pl.BlockSpec((1, H1), lambda i, u, it: (0, 0)),     # b1
            pl.BlockSpec((H1, H2), lambda i, u, it: (0, 0)),    # w2
            pl.BlockSpec((1, H2), lambda i, u, it: (0, 0)),     # b2
            pl.BlockSpec((1, H2), lambda i, u, it: (0, 0)),     # w3 (row)
            pl.BlockSpec((1, 1), lambda i, u, it: (0, 0)),      # b3
        ],
        out_specs=pl.BlockSpec((TB, 1), lambda i, u, it: (i, 0)),
        scratch_shapes=[
            pltpu.VMEM((TB, E), jnp.float32),    # gathered user embeddings
            pltpu.VMEM((TB, E), jnp.float32),    # gathered item embeddings
            pltpu.SemaphoreType.DMA((2,)),       # user / item DMA streams
        ],
    )

    out = pl.pallas_call(
        ncf_kernel,
        grid_spec=grid_spec,
        out_shape=jax.ShapeDtypeStruct((Bp, 1), jnp.float32),
        compiler_params=pltpu.CompilerParams(
            dimension_semantics=("parallel",),   # batch tiles are independent
        ),
    )(uidx, iidx, emb_user, emb_item,
      params["w1u"], params["w1i"], params["b1"],
      params["w2"], params["b2"],
      params["w3"], params["b3"])

    return out[:B, 0]   # (B,) — matches torch output.squeeze()


def init_params(key, num_users, num_items, embedding_dim):
    E = embedding_dim
    H1, H2 = E // 2, E // 4
    ks = jax.random.split(key, 8)
    scale = 0.1
    # fc1 weight in PyTorch is (H1, 2E); we store its transpose (2E, H1) and
    # split along the input axis into user / item halves.
    w1 = scale * jax.random.normal(ks[2], (2 * E, H1), jnp.float32)
    # TODO(synk): embeddings/weights could be stored in bf16 to halve the HBM
    # gather traffic; kept f32 here to avoid packed-dtype single-row DMA issues.
    return {
        "embedding_user": scale * jax.random.normal(ks[0], (num_users, E), jnp.float32),
        "embedding_item": scale * jax.random.normal(ks[1], (num_items, E), jnp.float32),
        "w1u": w1[:E, :],
        "w1i": w1[E:, :],
        "b1":  scale * jax.random.normal(ks[3], (1, H1), jnp.float32),
        "w2":  scale * jax.random.normal(ks[4], (H1, H2), jnp.float32),
        "b2":  scale * jax.random.normal(ks[5], (1, H2), jnp.float32),
        "w3":  scale * jax.random.normal(ks[6], (1, H2), jnp.float32),  # fc3.weight layout
        "b3":  scale * jax.random.normal(ks[7], (1, 1), jnp.float32),
    }


def ncf_reference(user_indices, item_indices, params):
    """Pure-JAX reference mirroring the PyTorch forward exactly."""
    ue = jnp.take(params["embedding_user"], user_indices, axis=0)
    ie = jnp.take(params["embedding_item"], item_indices, axis=0)
    v = jnp.concatenate([ue, ie], axis=-1)
    w1 = jnp.concatenate([params["w1u"], params["w1i"]], axis=0)
    x = v @ w1 + params["b1"]
    x = jnp.maximum(x, 0.0)
    x = x @ params["w2"] + params["b2"]
    x = jnp.maximum(x, 0.0)
    x = x @ params["w3"].T + params["b3"]
    return jnp.squeeze(jax.nn.sigmoid(x), axis=-1)


if __name__ == "__main__":
    num_users, num_items, embedding_dim = 10, 12, 32
    batch = 8

    key = jax.random.PRNGKey(0)
    pkey, ukey, ikey = jax.random.split(key, 3)
    params = init_params(pkey, num_users, num_items, embedding_dim)

    user_indices = jax.random.randint(ukey, (batch,), 0, num_users, dtype=jnp.int32)
    item_indices = jax.random.randint(ikey, (batch,), 0, num_items, dtype=jnp.int32)

    out = ncf_forward(user_indices, item_indices, params)
    out = jax.block_until_ready(out)

    ref = ncf_reference(user_indices, item_indices, params)
    assert out.shape == (batch,)
    assert jnp.allclose(out, ref, atol=1e-5, rtol=1e-5), (out, ref)

    print("KERNEL_OK")
</pallas_src>

<mosaic_0001>
module attributes {stable_mosaic.version = 11 : i64} {
  func.func @ncf_kernel(%arg0: i32, %arg1: memref<8xi32, #tpu.memory_space<smem>>, %arg2: memref<8xi32, #tpu.memory_space<smem>>, %arg3: memref<10x32xf32, #tpu.memory_space<any>>, %arg4: memref<12x32xf32, #tpu.memory_space<any>>, %arg5: memref<32x16xf32, #tpu.memory_space<vmem>>, %arg6: memref<32x16xf32, #tpu.memory_space<vmem>>, %arg7: memref<1x16xf32, #tpu.memory_space<vmem>>, %arg8: memref<16x8xf32, #tpu.memory_space<vmem>>, %arg9: memref<1x8xf32, #tpu.memory_space<vmem>>, %arg10: memref<1x8xf32, #tpu.memory_space<vmem>>, %arg11: memref<1x1xf32, #tpu.memory_space<vmem>>, %arg12: memref<8x1xf32, #tpu.memory_space<vmem>>, %arg13: memref<8x32xf32, #tpu.memory_space<vmem>>, %arg14: memref<8x32xf32, #tpu.memory_space<vmem>>, %arg15: memref<2x!tpu.dma_semaphore, #tpu.memory_space<semaphore_mem>>) attributes {dimension_semantics = [#tpu.dimension_semantics<parallel>], iteration_bounds = array<i64: 1>, scalar_prefetch = 2 : i64, scratch_operands = 3 : i64, tpu.core_type = #tpu.core_type<tc>, window_params = [{}, {}, {pipeline_mode = #tpu.pipeline_mode<synchronous>, transform_indices = @transform_2, window_bounds = array<i64: 32, 16>}, {pipeline_mode = #tpu.pipeline_mode<synchronous>, transform_indices = @transform_3, window_bounds = array<i64: 32, 16>}, {pipeline_mode = #tpu.pipeline_mode<synchronous>, transform_indices = @transform_4, window_bounds = array<i64: 1, 16>}, {pipeline_mode = #tpu.pipeline_mode<synchronous>, transform_indices = @transform_5, window_bounds = array<i64: 16, 8>}, {pipeline_mode = #tpu.pipeline_mode<synchronous>, transform_indices = @transform_6, window_bounds = array<i64: 1, 8>}, {pipeline_mode = #tpu.pipeline_mode<synchronous>, transform_indices = @transform_7, window_bounds = array<i64: 1, 8>}, {pipeline_mode = #tpu.pipeline_mode<synchronous>, transform_indices = @transform_8, window_bounds = array<i64: 1, 1>}, {transform_indices = @transform_9, window_bounds = array<i64: 8, 1>}]} {
    %c8_i32 = arith.constant 8 : i32
    %0 = arith.muli %arg0, %c8_i32 : i32
    %c0_i32 = arith.constant 0 : i32
    %c8_i32_0 = arith.constant 8 : i32
    %1 = arith.addi %c0_i32, %c8_i32_0 : i32
    %c1_i32 = arith.constant 1 : i32
    scf.for %arg16 = %c0_i32 to %1 step %c1_i32  : i32 {
      %c1_i32_31 = arith.constant 1 : i32
      %36 = arith.muli %arg16, %c1_i32_31 : i32
      %c0_i32_32 = arith.constant 0 : i32
      %37 = arith.addi %c0_i32_32, %36 : i32
      %38 = arith.addi %0, %37 : i32
      %39 = arith.index_cast %38 : i32 to index
      %40 = memref.load %arg1[%39] : memref<8xi32, #tpu.memory_space<smem>>
      %41 = arith.addi %0, %37 : i32
      %42 = arith.index_cast %41 : i32 to index
      %43 = memref.load %arg2[%42] : memref<8xi32, #tpu.memory_space<smem>>
      %c0_i32_33 = arith.constant 0 : i32
      %c0_i32_34 = arith.constant 0 : i32
      %44 = tpu.memref_slice %arg3[%40, %c0_i32_34] : memref<10x32xf32, #tpu.memory_space<any>> -> memref<1x32xf32, #tpu.memory_space<any>>
      %45 = tpu.memref_squeeze %44 : memref<1x32xf32, #tpu.memory_space<any>> -> memref<32xf32, #tpu.memory_space<any>>
      %c0_i32_35 = arith.constant 0 : i32
      %46 = tpu.memref_slice %arg13[%37, %c0_i32_35] : memref<8x32xf32, #tpu.memory_space<vmem>> -> memref<1x32xf32, #tpu.memory_space<vmem>>
      %47 = tpu.memref_squeeze %46 : memref<1x32xf32, #tpu.memory_space<vmem>> -> memref<32xf32, #tpu.memory_space<vmem>>
      %48 = tpu.memref_slice %arg15[%c0_i32_33] : memref<2x!tpu.dma_semaphore, #tpu.memory_space<semaphore_mem>> -> memref<1x!tpu.dma_semaphore, #tpu.memory_space<semaphore_mem>>
      %49 = tpu.memref_squeeze %48 : memref<1x!tpu.dma_semaphore, #tpu.memory_space<semaphore_mem>> -> memref<!tpu.dma_semaphore, #tpu.memory_space<semaphore_mem>>
      tpu.enqueue_dma source(%45 : memref<32xf32, #tpu.memory_space<any>>) target(%47 : memref<32xf32, #tpu.memory_space<vmem>>) target_semaphore(%49 : memref<!tpu.dma_semaphore, #tpu.memory_space<semaphore_mem>>)
      %c1_i32_36 = arith.constant 1 : i32
      %c0_i32_37 = arith.constant 0 : i32
      %50 = tpu.memref_slice %arg4[%43, %c0_i32_37] : memref<12x32xf32, #tpu.memory_space<any>> -> memref<1x32xf32, #tpu.memory_space<any>>
      %51 = tpu.memref_squeeze %50 : memref<1x32xf32, #tpu.memory_space<any>> -> memref<32xf32, #tpu.memory_space<any>>
      %c0_i32_38 = arith.constant 0 : i32
      %52 = tpu.memref_slice %arg14[%37, %c0_i32_38] : memref<8x32xf32, #tpu.memory_space<vmem>> -> memref<1x32xf32, #tpu.memory_space<vmem>>
      %53 = tpu.memref_squeeze %52 : memref<1x32xf32, #tpu.memory_space<vmem>> -> memref<32xf32, #tpu.memory_space<vmem>>
      %54 = tpu.memref_slice %arg15[%c1_i32_36] : memref<2x!tpu.dma_semaphore, #tpu.memory_space<semaphore_mem>> -> memref<1x!tpu.dma_semaphore, #tpu.memory_space<semaphore_mem>>
      %55 = tpu.memref_squeeze %54 : memref<1x!tpu.dma_semaphore, #tpu.memory_space<semaphore_mem>> -> memref<!tpu.dma_semaphore, #tpu.memory_space<semaphore_mem>>
      tpu.enqueue_dma source(%51 : memref<32xf32, #tpu.memory_space<any>>) target(%53 : memref<32xf32, #tpu.memory_space<vmem>>) target_semaphore(%55 : memref<!tpu.dma_semaphore, #tpu.memory_space<semaphore_mem>>)
    }
    %c8_i32_1 = arith.constant 8 : i32
    %c0_i32_2 = arith.constant 0 : i32
    %c8_i32_3 = arith.constant 8 : i32
    %2 = arith.addi %c0_i32_2, %c8_i32_3 : i32
    %c1_i32_4 = arith.constant 1 : i32
    scf.for %arg16 = %c0_i32_2 to %2 step %c1_i32_4  : i32 {
      %c1_i32_31 = arith.constant 1 : i32
      %36 = arith.muli %arg16, %c1_i32_31 : i32
      %c0_i32_32 = arith.constant 0 : i32
      %37 = arith.addi %c0_i32_32, %36 : i32
      %c0_i32_33 = arith.constant 0 : i32
      %c0_i32_34 = arith.constant 0 : i32
      %c0_i32_35 = arith.constant 0 : i32
      %38 = tpu.memref_slice %arg3[%c0_i32_33, %c0_i32_35] : memref<10x32xf32, #tpu.memory_space<any>> -> memref<1x32xf32, #tpu.memory_space<any>>
      %39 = tpu.memref_squeeze %38 : memref<1x32xf32, #tpu.memory_space<any>> -> memref<32xf32, #tpu.memory_space<any>>
      %c0_i32_36 = arith.constant 0 : i32
      %40 = tpu.memref_slice %arg13[%37, %c0_i32_36] : memref<8x32xf32, #tpu.memory_space<vmem>> -> memref<1x32xf32, #tpu.memory_space<vmem>>
      %41 = tpu.memref_squeeze %40 : memref<1x32xf32, #tpu.memory_space<vmem>> -> memref<32xf32, #tpu.memory_space<vmem>>
      %42 = tpu.memref_slice %arg15[%c0_i32_34] : memref<2x!tpu.dma_semaphore, #tpu.memory_space<semaphore_mem>> -> memref<1x!tpu.dma_semaphore, #tpu.memory_space<semaphore_mem>>
      %43 = tpu.memref_squeeze %42 : memref<1x!tpu.dma_semaphore, #tpu.memory_space<semaphore_mem>> -> memref<!tpu.dma_semaphore, #tpu.memory_space<semaphore_mem>>
      tpu.wait_dma2 semaphore(%43 : memref<!tpu.dma_semaphore, #tpu.memory_space<semaphore_mem>>) src(%39 : memref<32xf32, #tpu.memory_space<any>>) dst(%41 : memref<32xf32, #tpu.memory_space<vmem>>)
      %c0_i32_37 = arith.constant 0 : i32
      %c1_i32_38 = arith.constant 1 : i32
      %c0_i32_39 = arith.constant 0 : i32
      %44 = tpu.memref_slice %arg4[%c0_i32_37, %c0_i32_39] : memref<12x32xf32, #tpu.memory_space<any>> -> memref<1x32xf32, #tpu.memory_space<any>>
      %45 = tpu.memref_squeeze %44 : memref<1x32xf32, #tpu.memory_space<any>> -> memref<32xf32, #tpu.memory_space<any>>
      %c0_i32_40 = arith.constant 0 : i32
      %46 = tpu.memref_slice %arg14[%37, %c0_i32_40] : memref<8x32xf32, #tpu.memory_space<vmem>> -> memref<1x32xf32, #tpu.memory_space<vmem>>
      %47 = tpu.memref_squeeze %46 : memref<1x32xf32, #tpu.memory_space<vmem>> -> memref<32xf32, #tpu.memory_space<vmem>>
      %48 = tpu.memref_slice %arg15[%c1_i32_38] : memref<2x!tpu.dma_semaphore, #tpu.memory_space<semaphore_mem>> -> memref<1x!tpu.dma_semaphore, #tpu.memory_space<semaphore_mem>>
      %49 = tpu.memref_squeeze %48 : memref<1x!tpu.dma_semaphore, #tpu.memory_space<semaphore_mem>> -> memref<!tpu.dma_semaphore, #tpu.memory_space<semaphore_mem>>
      tpu.wait_dma2 semaphore(%49 : memref<!tpu.dma_semaphore, #tpu.memory_space<semaphore_mem>>) src(%45 : memref<32xf32, #tpu.memory_space<any>>) dst(%47 : memref<32xf32, #tpu.memory_space<vmem>>)
    }
    %c8_i32_5 = arith.constant 8 : i32
    %c0 = arith.constant 0 : index
    %c0_6 = arith.constant 0 : index
    %3 = vector.load %arg13[%c0, %c0_6] : memref<8x32xf32, #tpu.memory_space<vmem>>, vector<8x32xf32>
    %c0_7 = arith.constant 0 : index
    %c0_8 = arith.constant 0 : index
    %4 = vector.load %arg14[%c0_7, %c0_8] : memref<8x32xf32, #tpu.memory_space<vmem>>, vector<8x32xf32>
    %c0_9 = arith.constant 0 : index
    %c0_10 = arith.constant 0 : index
    %5 = vector.load %arg5[%c0_9, %c0_10] : memref<32x16xf32, #tpu.memory_space<vmem>>, vector<32x16xf32>
    %cst = arith.constant dense<0.000000e+00> : vector<8x16xf32>
    %6 = tpu.matmul %3, %5, %cst {dimension_numbers = #tpu.dot_dimension_numbers<[1], [0], [0], [1], [0, 0, 1, 1], [], []>} : vector<8x32xf32>, vector<32x16xf32>, vector<8x16xf32> -> vector<8x16xf32>
    %c0_11 = arith.constant 0 : index
    %c0_12 = arith.constant 0 : index
    %7 = vector.load %arg6[%c0_11, %c0_12] : memref<32x16xf32, #tpu.memory_space<vmem>>, vector<32x16xf32>
    %cst_13 = arith.constant dense<0.000000e+00> : vector<8x16xf32>
    %8 = tpu.matmul %4, %7, %cst_13 {dimension_numbers = #tpu.dot_dimension_numbers<[1], [0], [0], [1], [0, 0, 1, 1], [], []>} : vector<8x32xf32>, vector<32x16xf32>, vector<8x16xf32> -> vector<8x16xf32>
    %9 = arith.addf %6, %8 : vector<8x16xf32>
    %c0_14 = arith.constant 0 : index
    %c0_15 = arith.constant 0 : index
    %10 = vector.load %arg7[%c0_14, %c0_15] : memref<1x16xf32, #tpu.memory_space<vmem>>, vector<1x16xf32>
    %11 = vector.broadcast %10 : vector<1x16xf32> to vector<8x16xf32>
    %12 = arith.addf %9, %11 : vector<8x16xf32>
    %cst_16 = arith.constant 0.000000e+00 : f32
    %13 = vector.broadcast %cst_16 : f32 to vector<8x16xf32>
    %14 = arith.maximumf %12, %13 : vector<8x16xf32>
    %c0_17 = arith.constant 0 : index
    %c0_18 = arith.constant 0 : index
    %15 = vector.load %arg8[%c0_17, %c0_18] : memref<16x8xf32, #tpu.memory_space<vmem>>, vector<16x8xf32>
    %cst_19 = arith.constant dense<0.000000e+00> : vector<8x8xf32>
    %16 = tpu.matmul %14, %15, %cst_19 {dimension_numbers = #tpu.dot_dimension_numbers<[1], [0], [0], [1], [0, 0, 1, 1], [], []>} : vector<8x16xf32>, vector<16x8xf32>, vector<8x8xf32> -> vector<8x8xf32>
    %c0_20 = arith.constant 0 : index
    %c0_21 = arith.constant 0 : index
    %17 = vector.load %arg9[%c0_20, %c0_21] : memref<1x8xf32, #tpu.memory_space<vmem>>, vector<1x8xf32>
    %18 = vector.broadcast %17 : vector<1x8xf32> to vector<8x8xf32>
    %19 = arith.addf %16, %18 : vector<8x8xf32>
    %cst_22 = arith.constant 0.000000e+00 : f32
    %20 = vector.broadcast %cst_22 : f32 to vector<8x8xf32>
    %21 = arith.maximumf %19, %20 : vector<8x8xf32>
    %c0_23 = arith.constant 0 : index
    %c0_24 = arith.constant 0 : index
    %22 = vector.load %arg10[%c0_23, %c0_24] : memref<1x8xf32, #tpu.memory_space<vmem>>, vector<1x8xf32>
    %23 = vector.broadcast %22 : vector<1x8xf32> to vector<8x8xf32>
    %24 = arith.mulf %21, %23 : vector<8x8xf32>
    %cst_25 = arith.constant dense<0.000000e+00> : vector<8xf32>
    %25 = vector.multi_reduction <add>, %24, %cst_25 [1] : vector<8x8xf32> to vector<8xf32>
    %26 = vector.shape_cast %25 : vector<8xf32> to vector<8x1xf32>
    %c0_26 = arith.constant 0 : index
    %c0_27 = arith.constant 0 : index
    %27 = vector.load %arg11[%c0_26, %c0_27] : memref<1x1xf32, #tpu.memory_space<vmem>>, vector<1x1xf32>
    %28 = vector.broadcast %27 : vector<1x1xf32> to vector<8x1xf32>
    %29 = arith.addf %26, %28 : vector<8x1xf32>
    %30 = arith.negf %29 : vector<8x1xf32>
    %31 = math.exp %30 : vector<8x1xf32>
    %cst_28 = arith.constant 1.000000e+00 : f32
    %32 = vector.broadcast %cst_28 : f32 to vector<8x1xf32>
    %33 = arith.addf %32, %31 : vector<8x1xf32>
    %34 = arith.divf %32, %33 : vector<8x1xf32>
    %c0_29 = arith.constant 0 : index
    %c0_30 = arith.constant 0 : index
    %35 = vector.load %arg12[%c0_29, %c0_30] : memref<8x1xf32, #tpu.memory_space<vmem>>, vector<8x1xf32>
    tpu.vector_store %arg12[%c0_29, %c0_30], %34 {strides = array<i32>} : memref<8x1xf32, #tpu.memory_space<vmem>>, vector<8x1xf32>,
    return
  }
  func.func @transform_2(%arg0: i32, %arg1: memref<8xi32, #tpu.memory_space<smem>>, %arg2: memref<8xi32, #tpu.memory_space<smem>>) -> (i32, i32) {
    %c0_i32 = arith.constant 0 : i32
    %c0_i32_0 = arith.constant 0 : i32
    %c0_i32_1 = arith.constant 0 : i32
    return %c0_i32, %c0_i32_0 : i32, i32
  }
  func.func @transform_3(%arg0: i32, %arg1: memref<8xi32, #tpu.memory_space<smem>>, %arg2: memref<8xi32, #tpu.memory_space<smem>>) -> (i32, i32) {
    %c0_i32 = arith.constant 0 : i32
    %c0_i32_0 = arith.constant 0 : i32
    %c0_i32_1 = arith.constant 0 : i32
    return %c0_i32, %c0_i32_0 : i32, i32
  }
  func.func @transform_4(%arg0: i32, %arg1: memref<8xi32, #tpu.memory_space<smem>>, %arg2: memref<8xi32, #tpu.memory_space<smem>>) -> (i32, i32) {
    %c0_i32 = arith.constant 0 : i32
    %c0_i32_0 = arith.constant 0 : i32
    %c0_i32_1 = arith.constant 0 : i32
    return %c0_i32, %c0_i32_0 : i32, i32
  }
  func.func @transform_5(%arg0: i32, %arg1: memref<8xi32, #tpu.memory_space<smem>>, %arg2: memref<8xi32, #tpu.memory_space<smem>>) -> (i32, i32) {
    %c0_i32 = arith.constant 0 : i32
    %c0_i32_0 = arith.constant 0 : i32
    %c0_i32_1 = arith.constant 0 : i32
    return %c0_i32, %c0_i32_0 : i32, i32
  }
  func.func @transform_6(%arg0: i32, %arg1: memref<8xi32, #tpu.memory_space<smem>>, %arg2: memref<8xi32, #tpu.memory_space<smem>>) -> (i32, i32) {
    %c0_i32 = arith.constant 0 : i32
    %c0_i32_0 = arith.constant 0 : i32
    %c0_i32_1 = arith.constant 0 : i32
    return %c0_i32, %c0_i32_0 : i32, i32
  }
  func.func @transform_7(%arg0: i32, %arg1: memref<8xi32, #tpu.memory_space<smem>>, %arg2: memref<8xi32, #tpu.memory_space<smem>>) -> (i32, i32) {
    %c0_i32 = arith.constant 0 : i32
    %c0_i32_0 = arith.constant 0 : i32
    %c0_i32_1 = arith.constant 0 : i32
    return %c0_i32, %c0_i32_0 : i32, i32
  }
  func.func @transform_8(%arg0: i32, %arg1: memref<8xi32, #tpu.memory_space<smem>>, %arg2: memref<8xi32, #tpu.memory_space<smem>>) -> (i32, i32) {
    %c0_i32 = arith.constant 0 : i32
    %c0_i32_0 = arith.constant 0 : i32
    %c0_i32_1 = arith.constant 0 : i32
    return %c0_i32, %c0_i32_0 : i32, i32
  }
  func.func @transform_9(%arg0: i32, %arg1: memref<8xi32, #tpu.memory_space<smem>>, %arg2: memref<8xi32, #tpu.memory_space<smem>>) -> (i32, i32) {
    %c0_i32 = arith.constant 0 : i32
    %c0_i32_0 = arith.constant 0 : i32
    return %arg0, %c0_i32 : i32, i32
  }
}

</mosaic_0001>

<llo_original>
// kernel: tpu_custom_call.1
$region0: #{tpu_custom_call.1}
  #allocation0 [shape = 'u32[]', space=smem, size = 0x4, offset = 0x4, fixed_abs, tag = 'smem constant byte address 0x4 - core index']
  #allocation1 [shape = 'u32[72,128]{1,0:T(1,128)}', space=vmem, size = 0x9000, scoped, tag = 'internal scratch']
  #allocation2 [shape = 'f32[8,32]{1,0:T(8,128)}', space=vmem, size = 0x1000, scoped, tag = 'scratch operand']
  #allocation3 [shape = 'f32[8,32]{1,0:T(8,128)}', space=vmem, size = 0x1000, scoped, tag = 'scratch operand']
  #allocation4 [shape = 's32[2]{0}', space=sflag, size = 0x8, scoped, tag = 'scratch operand']
  #allocation5 [shape = 's32[1]{0}', space=sflag, size = 0x4, scoped, tag = 'scoped memory for tpu_custom_call.1']
  #allocation6 [shape = 'u8[512]{0}', space=smem, size = 0x200, scoped, tag = 'prefetched SMEM operand 0']
  #allocation7 [shape = 'u8[512]{0}', space=smem, size = 0x200, scoped, tag = 'prefetched SMEM operand 1']
  #allocation8 [shape = 'f32[1,1]{1,0:T(1,128)S(1)}', space=vmem, size = 0x200, scoped, tag = 'scoped memory for tpu_custom_call.1']
  #allocation9 [shape = 's32[]', space=sflag, size = 0x4, offset = 0, fixed_abs, tag = 'sflag constant byte address 0x0 - dummy sync flag']
  #allocation10 [shape = 's32[]', space=sflag, size = 0x4, offset = 0, fixed_abs, tag = 'sflag constant byte address 0x0 - dummy sync flag']
  %s0 = inlined_call_operand.vmem [shape: s32[8], index: 0, kind: input, shape index: {}]
  %s1 = inlined_call_operand.vmem [shape: s32[8], index: 1, kind: input, shape index: {}]
  %s2 = inlined_call_operand.vmem [shape: f32[10,32], index: 2, kind: input, shape index: {}]
  %s3 = inlined_call_operand.vmem [shape: f32[12,32], index: 3, kind: input, shape index: {}]
  %s4 = inlined_call_operand.vmem [shape: f32[32,16], index: 4, kind: input, shape index: {}]
  %s5 = inlined_call_operand.vmem [shape: f32[32,16], index: 5, kind: input, shape index: {}]
  %s6 = inlined_call_operand.vmem [shape: f32[1,16], index: 6, kind: input, shape index: {}]
  %s7 = inlined_call_operand.vmem [shape: f32[16,8], index: 7, kind: input, shape index: {}]
  %s8 = inlined_call_operand.vmem [shape: f32[1,8], index: 8, kind: input, shape index: {}]
  %s9 = inlined_call_operand.vmem [shape: f32[1,8], index: 9, kind: input, shape index: {}]
  %s10 = inlined_call_operand.<no memory space> [shape: f32[1,1], index: 10, kind: input, shape index: {}]
  %s11 = inlined_call_operand.vmem [shape: f32[8,1], index: 11, kind: output, shape index: {}]
  %s12 = sld [smem:[#allocation0]]
  $region112: #{tpu_custom_call.1} parent=0
    _
  %s14 = ssub.s32 1, %s12
  %s15 = scalar_select 0, %s14, %s12
  %s17 = sshll.u32 %s0, 4
  %s18 = int_to_ptr.vmem [resolvable:$true] %s17
  %20 = dma.vmem_to_smem %s18, 16, [#allocation6], [#allocation5]
  %s22 = sshll.u32 %s1, 4
  %s23 = int_to_ptr.vmem [resolvable:$true] %s22
  %25 = dma.vmem_to_smem %s23, 16, [#allocation7], [#allocation5]
  %v26 = vstv %s10
  %27 = vst [vmem:[#allocation8] sm:$0x1] %v26
  %29 = dma.done [#allocation5], 32
  %30 = sfence
  // Predicated region
  $region2: #{tpu_custom_call.1} parent=0 // pred_check
    _
  $region3: #{tpu_custom_call.1} parent=0 // pred_check_branch
    %32 = sbr.rel (0) target = $region5
  $region4: #{tpu_custom_call.1} parent=0 // pred_region
    _
  $region5: #{tpu_custom_call.1} parent=0 // pred_fallthru
    _
  // Predicated region
  $region6: #{tpu_custom_call.1} parent=0 // pred_check
    _
  $region7: #{tpu_custom_call.1} parent=0 // pred_check_branch
    %34 = sbr.rel (0) target = $region9
  $region8: #{tpu_custom_call.1} parent=0 // pred_region
    _
  $region9: #{tpu_custom_call.1} parent=0 // pred_fallthru
    _
  // Predicated region
  $region10: #{tpu_custom_call.1} parent=0 // pred_check
    _
  $region11: #{tpu_custom_call.1} parent=0 // pred_check_branch
    %36 = sbr.rel (0) target = $region13
  $region12: #{tpu_custom_call.1} parent=0 // pred_region
    _
  $region13: #{tpu_custom_call.1} parent=0 // pred_fallthru
    _
  // Predicated region
  $region14: #{tpu_custom_call.1} parent=0 // pred_check
    _
  $region15: #{tpu_custom_call.1} parent=0 // pred_check_branch
    %38 = sbr.rel (0) target = $region17
  $region16: #{tpu_custom_call.1} parent=0 // pred_region
    _
  $region17: #{tpu_custom_call.1} parent=0 // pred_fallthru
    _
  // Predicated region
  $region18: #{tpu_custom_call.1} parent=0 // pred_check
    _
  $region19: #{tpu_custom_call.1} parent=0 // pred_check_branch
    %40 = sbr.rel (0) target = $region21
  $region20: #{tpu_custom_call.1} parent=0 // pred_region
    _
  $region21: #{tpu_custom_call.1} parent=0 // pred_fallthru
    _
  // Predicated region
  $region22: #{tpu_custom_call.1} parent=0 // pred_check
    _
  $region23: #{tpu_custom_call.1} parent=0 // pred_check_branch
    %42 = sbr.rel (0) target = $region25
  $region24: #{tpu_custom_call.1} parent=0 // pred_region
    _
  $region25: #{tpu_custom_call.1} parent=0 // pred_fallthru
    _
  // Predicated region
  $region26: #{tpu_custom_call.1} parent=0 // pred_check
    _
  $region27: #{tpu_custom_call.1} parent=0 // pred_check_branch
    %44 = sbr.rel (0) target = $region29
  $region28: #{tpu_custom_call.1} parent=0 // pred_region
    _
  $region29: #{tpu_custom_call.1} parent=0 // pred_fallthru
    _
  %s45 = smul.u32 0, 8
  loop: start=0, step=1, limit=8
  $region30: #{tpu_custom_call.1} parent=0 // loop_pre_header
    _
  $region31: #{tpu_custom_call.1} parent=0 // loop_header
    %s47 = sphi 0, %s51
    %p48 = scmp.ge.s32.totalorder %s47, 8
  $region32: #{tpu_custom_call.1} parent=0 // loop_header_branch
    %50 = sbr.rel (%p48) target = $region36
  $region33: #{tpu_custom_call.1} parent=0 // loop_body
    %s52 = sadd.s32 %s45, %s47
    %s53 = sld [smem:[#allocation6 + %s52]]
    %s54 = sld [smem:[#allocation7 + %s52]]
    %s55 = scalar_lea.vmem %s2, %s53
    %s56 = scalar_lea.vmem [#allocation2], %s47
    // Predicated region
    $region37: #{tpu_custom_call.1} parent=33 // pred_check
      _
    $region38: #{tpu_custom_call.1} parent=33 // pred_check_branch
      %58 = sbr.rel target = $region40
    $region39: #{tpu_custom_call.1} parent=33 // pred_region
      // Predicated region
      $region52: #{tpu_custom_call.1} parent=39 // pred_check
        _
      $region53: #{tpu_custom_call.1} parent=39 // pred_check_branch
        %74 = sbr.rel (0) target = $region55
      $region54: #{tpu_custom_call.1} parent=39 // pred_region
        %s76 = ssub.s32 2, 1
        loop: start=0, step=1, limit=1
        $region56: #{tpu_custom_call.1} parent=54 // loop_pre_header
          _
        $region57: #{tpu_custom_call.1} parent=54 // loop_header
          %s78 = sphi 0, %s82
          %p79 = scmp.ge.s32.totalorder %s78, 1
          %s83 = sphi %s55, %s55
          %s84 = sphi %s56, %s56
        $region58: #{tpu_custom_call.1} parent=54 // loop_header_branch
          %81 = sbr.rel (%p79) target = $region62
        $region59: #{tpu_custom_call.1} parent=54 // loop_body
          %v85 = vld [vmem:[%s83] sm:%s76]
          %86 = vst [vmem:[%s84] sm:%s76] %v85
        $region60: #{tpu_custom_call.1} parent=54 // loop_footer
          %s82 = sadd.s32 1, %s78
        $region61: #{tpu_custom_call.1} parent=54 // loop_footer_branch
          %77 = sbr.rel target = $region57
        $region62: #{tpu_custom_call.1} parent=54 // loop_exit
          _
      $region55: #{tpu_custom_call.1} parent=39 // pred_fallthru
        _
    $region40: #{tpu_custom_call.1} parent=33 // pred_fallthru
      _
    // Predicated region
    $region41: #{tpu_custom_call.1} parent=33 // pred_check
      _
    $region42: #{tpu_custom_call.1} parent=33 // pred_check_branch
      %60 = sbr.rel (0) target = $region44
    $region43: #{tpu_custom_call.1} parent=33 // pred_region
      %s62 = ssub.s32 2, 1
      loop: start=0, step=1, limit=1
      $region45: #{tpu_custom_call.1} parent=43 // loop_pre_header
        _
      $region46: #{tpu_custom_call.1} parent=43 // loop_header
        %s64 = sphi 0, %s68
        %p65 = scmp.ge.s32.totalorder %s64, 1
        %s69 = sphi %s55, %s55
        %s70 = sphi %s56, %s56
      $region47: #{tpu_custom_call.1} parent=43 // loop_header_branch
        %67 = sbr.rel (%p65) target = $region51
      $region48: #{tpu_custom_call.1} parent=43 // loop_body
        %v71 = vld [vmem:[%s69] sm:%s62]
        %72 = vst [vmem:[%s70] sm:%s62] %v71
      $region49: #{tpu_custom_call.1} parent=43 // loop_footer
        %s68 = sadd.s32 1, %s64
      $region50: #{tpu_custom_call.1} parent=43 // loop_footer_branch
        %63 = sbr.rel target = $region46
      $region51: #{tpu_custom_call.1} parent=43 // loop_exit
        _
    $region44: #{tpu_custom_call.1} parent=33 // pred_fallthru
      _
    // Predicated region
    $region63: #{tpu_custom_call.1} parent=33 // pred_check
      _
    $region64: #{tpu_custom_call.1} parent=33 // pred_check_branch
      %89 = sbr.rel (0) target = $region66
    $region65: #{tpu_custom_call.1} parent=33 // pred_region
      %90 = vsyncadd [#allocation4], 16
    $region66: #{tpu_custom_call.1} parent=33 // pred_fallthru
      _
    %s91 = scalar_lea.vmem %s3, %s54
    %s92 = scalar_lea.vmem [#allocation3], %s47
    %s93 = scalar_lea.sflag [#allocation4], 1
    // Predicated region
    $region67: #{tpu_custom_call.1} parent=33 // pred_check
      _
    $region68: #{tpu_custom_call.1} parent=33 // pred_check_branch
      %95 = sbr.rel target = $region70
    $region69: #{tpu_custom_call.1} parent=33 // pred_region
      // Predicated region
      $region82: #{tpu_custom_call.1} parent=69 // pred_check
        _
      $region83: #{tpu_custom_call.1} parent=69 // pred_check_branch
        %111 = sbr.rel (0) target = $region85
      $region84: #{tpu_custom_call.1} parent=69 // pred_region
        %s113 = ssub.s32 2, 1
        loop: start=0, step=1, limit=1
        $region86: #{tpu_custom_call.1} parent=84 // loop_pre_header
          _
        $region87: #{tpu_custom_call.1} parent=84 // loop_header
          %s115 = sphi 0, %s119
          %p116 = scmp.ge.s32.totalorder %s115, 1
          %s120 = sphi %s91, %s91
          %s121 = sphi %s92, %s92
        $region88: #{tpu_custom_call.1} parent=84 // loop_header_branch
          %118 = sbr.rel (%p116) target = $region92
        $region89: #{tpu_custom_call.1} parent=84 // loop_body
          %v122 = vld [vmem:[%s120] sm:%s113]
          %123 = vst [vmem:[%s121] sm:%s113] %v122
        $region90: #{tpu_custom_call.1} parent=84 // loop_footer
          %s119 = sadd.s32 1, %s115
        $region91: #{tpu_custom_call.1} parent=84 // loop_footer_branch
          %114 = sbr.rel target = $region87
        $region92: #{tpu_custom_call.1} parent=84 // loop_exit
          _
      $region85: #{tpu_custom_call.1} parent=69 // pred_fallthru
        _
    $region70: #{tpu_custom_call.1} parent=33 // pred_fallthru
      _
    // Predicated region
    $region71: #{tpu_custom_call.1} parent=33 // pred_check
      _
    $region72: #{tpu_custom_call.1} parent=33 // pred_check_branch
      %97 = sbr.rel (0) target = $region74
    $region73: #{tpu_custom_call.1} parent=33 // pred_region
      %s99 = ssub.s32 2, 1
      loop: start=0, step=1, limit=1
      $region75: #{tpu_custom_call.1} parent=73 // loop_pre_header
        _
      $region76: #{tpu_custom_call.1} parent=73 // loop_header
        %s101 = sphi 0, %s105
        %p102 = scmp.ge.s32.totalorder %s101, 1
        %s106 = sphi %s91, %s91
        %s107 = sphi %s92, %s92
      $region77: #{tpu_custom_call.1} parent=73 // loop_header_branch
        %104 = sbr.rel (%p102) target = $region81
      $region78: #{tpu_custom_call.1} parent=73 // loop_body
        %v108 = vld [vmem:[%s106] sm:%s99]
        %109 = vst [vmem:[%s107] sm:%s99] %v108
      $region79: #{tpu_custom_call.1} parent=73 // loop_footer
        %s105 = sadd.s32 1, %s101
      $region80: #{tpu_custom_call.1} parent=73 // loop_footer_branch
        %100 = sbr.rel target = $region76
      $region81: #{tpu_custom_call.1} parent=73 // loop_exit
        _
    $region74: #{tpu_custom_call.1} parent=33 // pred_fallthru
      _
    // Predicated region
    $region93: #{tpu_custom_call.1} parent=33 // pred_check
      _
    $region94: #{tpu_custom_call.1} parent=33 // pred_check_branch
      %126 = sbr.rel (0) target = $region96
    $region95: #{tpu_custom_call.1} parent=33 // pred_region
      %127 = vsyncadd %s93, 16
    $region96: #{tpu_custom_call.1} parent=33 // pred_fallthru
      _
  $region34: #{tpu_custom_call.1} parent=0 // loop_footer
    %s51 = sadd.s32 1, %s47
  $region35: #{tpu_custom_call.1} parent=0 // loop_footer_branch
    %46 = sbr.rel target = $region31
  $region36: #{tpu_custom_call.1} parent=0 // loop_exit
    _
  loop: start=0, step=1, limit=8
  $region97: #{tpu_custom_call.1} parent=0 // loop_pre_header
    _
  $region98: #{tpu_custom_call.1} parent=0 // loop_header
    %s129 = sphi 0, %s133
    %p130 = scmp.ge.s32.totalorder %s129, 8
  $region99: #{tpu_custom_call.1} parent=0 // loop_header_branch
    %132 = sbr.rel (%p130) target = $region103
  $region100: #{tpu_custom_call.1} parent=0 // loop_body
    %135 = dma.done [#allocation4], 16
    %s136 = scalar_lea.sflag [#allocation4], 1
    %138 = dma.done %s136, 16
  $region101: #{tpu_custom_call.1} parent=0 // loop_footer
    %s133 = sadd.s32 1, %s129
  $region102: #{tpu_custom_call.1} parent=0 // loop_footer_branch
    %128 = sbr.rel target = $region98
  $region103: #{tpu_custom_call.1} parent=0 // loop_exit
    _
  %v139 = vld [vmem:[#allocation2] sm:$0xff]
  %v140 = vld [vmem:[#allocation3] sm:$0xff]
  %v141 = vld [vmem:[%s4] sm:$0xff]
  %v142 = vld [vmem:[%s4 + $0x8] sm:$0xff]
  %v143 = vld [vmem:[%s4 + $0x10] sm:$0xff]
  %v144 = vld [vmem:[%s4 + $0x18] sm:$0xff]
  %v145 = vld [vmem:[%s5] sm:$0xff]
  %v146 = vld [vmem:[%s5 + $0x8] sm:$0xff]
  %v147 = vld [vmem:[%s5 + $0x10] sm:$0xff]
  %v148 = vld [vmem:[%s5 + $0x18] sm:$0xff]
  %vm149 = vcmask 261120
  %v151 = vsel %vm149, %v140, 0
  %153 = vmatpush.msra.mxu0 0.0
  %154 = vmatpush.msra.mxu0 0.0
  %155 = vmatpush.msra.mxu0 0.0
  %156 = vmatpush.msra.mxu0 0.0
  %157 = vmatpush.msra.mxu0 0.0
  %158 = vmatpush.msra.mxu0 0.0
  %159 = vmatpush.msra.mxu0 0.0
  %160 = vmatpush.msra.mxu0 0.0
  %161 = vmatpush.msra.mxu0 0.0
  %162 = vmatpush.msra.mxu0 0.0
  %163 = vmatpush.msra.mxu0 0.0
  %164 = vmatpush.msra.mxu0 0.0
  %165 = vmatpush.msra.mxu0 %v148
  %166 = vmatpush.msra.mxu0 %v147
  %167 = vmatpush.msra.mxu0 %v146
  %168 = vmatpush.msra.mxu0 %v145
  %169 = vmatmul.f32.gmra.mxu0 %v151
  %v170 = vpop.f32.mrf.mxu0
  %v171 = vadd.f32 0.0, %v170
  %172 = vdwg.mxu0
  %v174 = vsel %vm149, %v139, 0
  %176 = vmatpush.msra.mxu0 0.0
  %177 = vmatpush.msra.mxu0 0.0
  %178 = vmatpush.msra.mxu0 0.0
  %179 = vmatpush.msra.mxu0 0.0
  %180 = vmatpush.msra.mxu0 0.0
  %181 = vmatpush.msra.mxu0 0.0
  %182 = vmatpush.msra.mxu0 0.0
  %183 = vmatpush.msra.mxu0 0.0
  %184 = vmatpush.msra.mxu0 0.0
  %185 = vmatpush.msra.mxu0 0.0
  %186 = vmatpush.msra.mxu0 0.0
  %187 = vmatpush.msra.mxu0 0.0
  %188 = vmatpush.msra.mxu0 %v144
  %189 = vmatpush.msra.mxu0 %v143
  %190 = vmatpush.msra.mxu0 %v142
  %191 = vmatpush.msra.mxu0 %v141
  %192 = vmatmul.f32.gmra.mxu0 %v174
  %v193 = vpop.f32.mrf.mxu0
  %v194 = vadd.f32 %v171, %v193
  %195 = vdwg.mxu0
  %v196 = vld [vmem:[%s6] sm:$0x1]
  %v198 = vperm.slane %v196, 0
  %v200 = vadd.f32 %v194, %v198
  %v201 = vmax.f32 %v200, 0.0
  %v202 = vld [vmem:[%s7] sm:$0xff]
  %v203 = vld [vmem:[%s7 + $0x8] sm:$0xff]
  %v204 = vld [vmem:[%s8] sm:$0x1]
  %v206 = vperm.slane %v204, 0
  %vm208 = vcmask 130048
  %v210 = vsel %vm208, %v201, 0
  %212 = vmatpush.msra.mxu0 0.0
  %213 = vmatpush.msra.mxu0 0.0
  %214 = vmatpush.msra.mxu0 0.0
  %215 = vmatpush.msra.mxu0 0.0
  %216 = vmatpush.msra.mxu0 0.0
  %217 = vmatpush.msra.mxu0 0.0
  %218 = vmatpush.msra.mxu0 0.0
  %219 = vmatpush.msra.mxu0 0.0
  %220 = vmatpush.msra.mxu0 0.0
  %221 = vmatpush.msra.mxu0 0.0
  %222 = vmatpush.msra.mxu0 0.0
  %223 = vmatpush.msra.mxu0 0.0
  %224 = vmatpush.msra.mxu0 0.0
  %225 = vmatpush.msra.mxu0 0.0
  %226 = vmatpush.msra.mxu0 %v203
  %227 = vmatpush.msra.mxu0 %v202
  %228 = vmatmul.f32.gmra.mxu0 %v210
  %v229 = vpop.f32.mrf.mxu0
  %v230 = vadd.f32 %v206, %v229
  %231 = vdwg.mxu0
  %v232 = vmax.f32 %v230, 0.0
  %v233 = vld [vmem:[%s9] sm:$0x1]
  %v235 = vperm.slane %v233, 0
  %v237 = vmul.f32 %v232, %v235
  %vm238 = vcmask 64512
  %v239 = vsel %vm238, %v237, 0.0
  %240 = vadd.xlane.f32.xlu0 %v239
  %v241 = vpop.xlane.xlu0 %240
  %v242 = vld [vmem:[#allocation8] sm:$0x1]
  %v244 = vperm.slane %v242, 0
  %v246 = vadd.f32 %v241, %v244
  %v247 = vxor.u32 %v246, 2147483648
  %v248 = vmul.f32 %v247, 1.442695
  %v249 = vpow.pop %v248
  %v250 = vadd.f32 %v249, 1.0
  %v251 = vrcp.pop %v250
  %v252 = vmul.f32 %v250, %v251
  %v253 = vsub.f32 1.0, %v252
  %v254 = vmul.f32 %v251, %v253
  %v255 = vadd.f32 %v251, %v254
  %vm256 = vweird.f32 %v250
  %vm257 = vweird.f32 %v251
  %vm258 = vmor %vm256, %vm257
  %v259 = vsel %vm258, %v251, %v255
  %v260 = vand.u32 2147483647, %v250
  %vm261 = vcmp.eq.f32.partialorder %v260, 8.507059e+37
  %v262 = vand.u32 %v250, 2147483648
  %v263 = vor.u32 1.1754944e-38, %v262
  %v264 = vsel %vm261, %v263, %v259
  %v265 = vmul.f32 1.0, %v264
  %vm266 = vcmask 7168
  %267 = vst.msk [vmem:[%s11] sm:$0xff] %vm266, %v265
  // Predicated region
  $region104: #{tpu_custom_call.1} parent=0 // pred_check
    _
  $region105: #{tpu_custom_call.1} parent=0 // pred_check_branch
    %269 = sbr.rel (0) target = $region107
  $region106: #{tpu_custom_call.1} parent=0 // pred_region
    _
  $region107: #{tpu_custom_call.1} parent=0 // pred_fallthru
    _
  // Predicated region
  $region108: #{tpu_custom_call.1} parent=0 // pred_check
    _
  $region109: #{tpu_custom_call.1} parent=0 // pred_check_branch
    %271 = sbr.rel (0) target = $region111
  $region110: #{tpu_custom_call.1} parent=0 // pred_region
    _
  $region111: #{tpu_custom_call.1} parent=0 // pred_fallthru
    _
  %272 = vsyncmov [#allocation4]
  %s273 = vpop.sfrf %272
  %p274 = scmp.eq.s32.totalorder %s273, 0
  %p275 = pneg %p274
  %277 = shalt.err (%p275)
  %s278 = scalar_lea.sflag [#allocation4], 1
  %279 = vsyncmov %s278
  %s280 = vpop.sfrf %279
  %p281 = scmp.eq.s32.totalorder %s280, 0
  %p282 = pneg %p281
  %284 = shalt.err (%p282)

</llo_original>
